<compile_context>
chip_gen: v6e
topology: v6e:2x2x1
jax: 0.10.0
libtpu: 0.0.40
codegen_flags: <defaults>
</compile_context>

<pallas_src>
import jax
import jax.numpy as jnp
from jax.experimental import pallas as pl
from jax.experimental.pallas import tpu as pltpu


def _round_up(n, m):
    return ((n + m - 1) // m) * m


def _cdiv(a, b):
    return (a + b - 1) // b


def _vmem_capacity_bytes():
    """Per-core VMEM capacity; conservative 64 MiB fallback (v7x-sized)."""
    try:
        info = pltpu.get_tpu_info()
        cap = getattr(info, "vmem_capacity_bytes", None)
        if cap:
            return int(cap)
    except Exception:
        pass
    return 64 * 1024 * 1024


def _self_attn1d_kernel(gamma_ref, x_ref, wv_ref, bv_ref, out_ref):
    # softmax over the size-1 T axis == 1.0, so: out = gamma * (x @ Wv + bv) + x
    x = x_ref[...]                                                    # (TB, Cp) f32
    xv = x.astype(wv_ref.dtype)                                       # no-op for f32, cheap for bf16
    v = jnp.dot(xv, wv_ref[...], preferred_element_type=jnp.float32)  # lane-dense (TB, Cp)
    v = v + bv_ref[...]
    out_ref[...] = gamma_ref[0, 0] * v + x


def self_attn1d(x, params, return_attn=False, weight_dtype=jnp.float32):
    """JAX/Pallas equivalent of Self_Attn1D.forward."""
    if x.ndim == 1:
        x = x[None]                      # controller branch: (C,) -> (1, C)
    x = x.astype(jnp.float32)
    B, C = x.shape

    wv_t = params["wv_t"].astype(weight_dtype)   # (C, C) pre-transposed: (in_ch, out_ch)
    bv = params["bv"].astype(jnp.float32)        # (1, C)
    gamma = params["gamma"].astype(jnp.float32)  # (1, 1) -> SMEM scalar

    # Lane-dense channel axis: pad C to a multiple of 128 (zeros), slice back after.
    Cp = _round_up(C, 128)
    if Cp != C:
        pc = Cp - C
        x = jnp.pad(x, ((0, 0), (0, pc)))
        wv_t = jnp.pad(wv_t, ((0, pc), (0, pc)))
        bv = jnp.pad(bv, ((0, 0), (0, pc)))

    w_item = jnp.dtype(weight_dtype).itemsize

    # Batch tile: target ~2 MiB of x per grid step, multiple of 8, <= 2048 rows.
    TB = max(8, min(2048, ((2 << 20) // (4 * Cp)) // 8 * 8))
    TB = min(TB, _round_up(B, 8))
    # v7x megacore: make sure the "parallel" axis has >= 2 grid steps when the
    # batch is big enough to split (no cost on single-TC v5e/v6e).
    if B > 8 and _cdiv(B, TB) < 2:
        TB = _round_up(_cdiv(B, 2), 8)

    vmem_cap = int(0.75 * _vmem_capacity_bytes())   # headroom for Mosaic scratch/sems

    def _need_bytes(tb):
        # The pipeline double-buffers every BlockSpec operand, including the
        # "resident" weight/bias blocks with a constant index_map.
        w_bytes = 2 * (Cp * Cp * w_item)            # wv_t (double-buffered)
        b_bytes = 2 * (Cp * 4)                      # bv   (double-buffered)
        io_bytes = 2 * 2 * (tb * Cp * 4)            # x in + out, each double-buffered
        return w_bytes + b_bytes + io_bytes

    while TB > 8 and _need_bytes(TB) > vmem_cap:
        TB = max(8, (TB // 2) // 8 * 8)
    # TODO(synk): for very large C (Cp*Cp weight no longer fits VMEM, C >~ 2-4k on
    # v7x) add a second "parallel" grid axis over output columns so wv_t streams
    # in (Cp, TN) tiles instead of being fully resident.

    vmem_limit = int(min(max(_need_bytes(TB) + (8 << 20), 32 << 20), vmem_cap))

    # Batch handling: only pad when the whole batch is a single partial tile
    # (<= 7 extra rows); for larger B rely on Pallas' partial trailing block so
    # we never do an extra HBM pass over x.
    if B % TB != 0 and B < TB:
        B_pad = TB
        x = jnp.pad(x, ((0, B_pad - B), (0, 0)))
    else:
        B_pad = B
    grid_b = _cdiv(B_pad, TB)

    out = pl.pallas_call(
        _self_attn1d_kernel,
        grid=(grid_b,),
        in_specs=[
            pl.BlockSpec(memory_space=pltpu.MemorySpace.SMEM),   # gamma scalar
            pl.BlockSpec((TB, Cp), lambda i: (i, 0)),            # x tile
            pl.BlockSpec((Cp, Cp), lambda i: (0, 0)),            # wv_t (resident)
            pl.BlockSpec((1, Cp), lambda i: (0, 0)),             # bv  (resident)
        ],
        out_specs=pl.BlockSpec((TB, Cp), lambda i: (i, 0)),
        out_shape=jax.ShapeDtypeStruct((B_pad, Cp), jnp.float32),
        compiler_params=pltpu.CompilerParams(
            dimension_semantics=("parallel",),
            vmem_limit_bytes=vmem_limit,
        ),
    )(gamma, x, wv_t, bv)

    out = out[:B, :C]
    if return_attn:
        # attention = softmax over a size-1 axis == 1.0; shape B x N x N with N = T = 1
        return out, jnp.ones((B, 1, 1), jnp.float32)
    return out, None


def _reference(x, params):
    """Plain-JAX reference mirroring the full PyTorch forward (incl. q/k/softmax)."""
    if x.ndim == 1:
        x = x[None]
    q = x @ params["wq"].T + params["bq"]
    k = x @ params["wk"].T + params["bk"]
    v = x @ params["wv_t"] + params["bv"]
    energy = jnp.sum(q * k, axis=-1, keepdims=True)[:, :, None]          # (B,1,1)
    attn = jax.nn.softmax(energy, axis=-1)                               # (B,1,1)
    out = params["gamma"][0, 0] * (v * attn[:, :, 0]) + x
    return out, attn


def init_params(key, in_dim, k=8):
    """Parameter init matching the module's __init__ shapes.

    q/k weights are kept only for the reference check — the forward output is
    provably independent of them (softmax over a size-1 axis is 1.0)."""
    cq = in_dim // k
    ks = jax.random.split(key, 6)
    bnd = 1.0 / jnp.sqrt(jnp.float32(in_dim))     # Conv1d default-style uniform bound
    return {
        "wq": jax.random.uniform(ks[0], (cq, in_dim), jnp.float32, -bnd, bnd),
        "bq": jax.random.uniform(ks[1], (1, cq), jnp.float32, -bnd, bnd),
        "wk": jax.random.uniform(ks[2], (cq, in_dim), jnp.float32, -bnd, bnd),
        "bk": jax.random.uniform(ks[3], (1, cq), jnp.float32, -bnd, bnd),
        # value weight stored pre-transposed as (in_ch, out_ch) for a lane-dense dot
        "wv_t": jax.random.uniform(ks[4], (in_dim, in_dim), jnp.float32, -bnd, bnd),
        "bv": jax.random.uniform(ks[5], (1, in_dim), jnp.float32, -bnd, bnd),
        "gamma": jnp.zeros((1, 1), jnp.float32),  # nn.Parameter(torch.zeros(1))
    }


if __name__ == "__main__":
    B, C, K = 2, 32, 8
    key = jax.random.PRNGKey(0)
    pkey, xkey = jax.random.split(key)

    params = init_params(pkey, C, K)
    x = jax.random.normal(xkey, (B, C), jnp.float32)

    # Faithful init (gamma == 0) -> out must equal x.
    out, attn = self_attn1d(x, params, return_attn=True)
    out, attn = jax.block_until_ready((out, attn))
    ref_out, ref_attn = _reference(x, params)
    assert jnp.allclose(out, ref_out, atol=1e-5), "output mismatch (gamma=0)"
    assert jnp.allclose(attn, ref_attn, atol=1e-5), "attention mismatch (gamma=0)"

    # Exercise the full value path with a nonzero gamma.
    params2 = dict(params, gamma=jnp.full((1, 1), 0.5, jnp.float32))
    out2, attn2 = self_attn1d(x, params2, return_attn=True)
    out2, attn2 = jax.block_until_ready((out2, attn2))
    ref_out2, ref_attn2 = _reference(x, params2)
    assert jnp.allclose(out2, ref_out2, atol=1e-5), "output mismatch (gamma=0.5)"
    assert jnp.allclose(attn2, ref_attn2, atol=1e-5), "attention mismatch (gamma=0.5)"

    # Controller branch: 1-D input (C,) -> (1, C), exercises the tiny-batch pad path.
    xc = jax.random.normal(jax.random.PRNGKey(1), (C,), jnp.float32)
    out3, _ = self_attn1d(xc, params2, return_attn=False)
    out3 = jax.block_until_ready(out3)
    ref_out3, _ = _reference(xc, params2)
    assert jnp.allclose(out3, ref_out3, atol=1e-5), "output mismatch (controller)"

    # Odd batch size (pad/slice path) with multiple sublane rows.
    x4 = jax.random.normal(jax.random.PRNGKey(2), (3, C), jnp.float32)
    out4, _ = self_attn1d(x4, params2, return_attn=False)
    out4 = jax.block_until_ready(out4)
    ref_out4, _ = _reference(x4, params2)
    assert jnp.allclose(out4, ref_out4, atol=1e-5), "output mismatch (B=3 padded)"

    # Larger batch: multiple grid steps + partial trailing block (no batch pad),
    # and bf16 weight streaming (f32 accumulate) with a looser tolerance.
    x5 = jax.random.normal(jax.random.PRNGKey(3), (100, C), jnp.float32)
    out5, _ = self_attn1d(x5, params2, return_attn=False)
    out5 = jax.block_until_ready(out5)
    ref_out5, _ = _reference(x5, params2)
    assert jnp.allclose(out5, ref_out5, atol=1e-5), "output mismatch (B=100)"

    out5b, _ = self_attn1d(x5, params2, return_attn=False, weight_dtype=jnp.bfloat16)
    out5b = jax.block_until_ready(out5b)
    assert jnp.allclose(out5b, ref_out5, atol=3e-2), "output mismatch (bf16 weights)"

    print("KERNEL_OK")
</pallas_src>

<mosaic_0001>
module attributes {stable_mosaic.version = 11 : i64} {
  func.func @_self_attn1d_kernel(%arg0: i32, %arg1: memref<1x1xf32, #tpu.memory_space<smem>>, %arg2: memref<8x128xf32, #tpu.memory_space<vmem>>, %arg3: memref<128x128xf32, #tpu.memory_space<vmem>>, %arg4: memref<1x128xf32, #tpu.memory_space<vmem>>, %arg5: memref<8x128xf32, #tpu.memory_space<vmem>>) attributes {dimension_semantics = [#tpu.dimension_semantics<parallel>], iteration_bounds = array<i64: 1>, scalar_prefetch = 0 : i64, scratch_operands = 0 : i64, tpu.core_type = #tpu.core_type<tc>, window_params = [{transform_indices = @transform_0, window_bounds = array<i64: 1, 1>}, {transform_indices = @transform_1, window_bounds = array<i64: 8, 128>}, {pipeline_mode = #tpu.pipeline_mode<synchronous>, transform_indices = @transform_2, window_bounds = array<i64: 128, 128>}, {pipeline_mode = #tpu.pipeline_mode<synchronous>, transform_indices = @transform_3, window_bounds = array<i64: 1, 128>}, {transform_indices = @transform_4, window_bounds = array<i64: 8, 128>}]} {
    %c0 = arith.constant 0 : index
    %c0_0 = arith.constant 0 : index
    %0 = vector.load %arg2[%c0, %c0_0] : memref<8x128xf32, #tpu.memory_space<vmem>>, vector<8x128xf32>
    %c0_1 = arith.constant 0 : index
    %c0_2 = arith.constant 0 : index
    %1 = vector.load %arg3[%c0_1, %c0_2] : memref<128x128xf32, #tpu.memory_space<vmem>>, vector<128x128xf32>
    %cst = arith.constant dense<0.000000e+00> : vector<8x128xf32>
    %2 = tpu.matmul %0, %1, %cst {dimension_numbers = #tpu.dot_dimension_numbers<[1], [0], [0], [1], [0, 0, 1, 1], [], []>} : vector<8x128xf32>, vector<128x128xf32>, vector<8x128xf32> -> vector<8x128xf32>
    %c0_3 = arith.constant 0 : index
    %c0_4 = arith.constant 0 : index
    %3 = vector.load %arg4[%c0_3, %c0_4] : memref<1x128xf32, #tpu.memory_space<vmem>>, vector<1x128xf32>
    %4 = vector.broadcast %3 : vector<1x128xf32> to vector<8x128xf32>
    %5 = arith.addf %2, %4 : vector<8x128xf32>
    %c0_5 = arith.constant 0 : index
    %c0_6 = arith.constant 0 : index
    %6 = memref.load %arg1[%c0_5, %c0_6] : memref<1x1xf32, #tpu.memory_space<smem>>
    %7 = vector.broadcast %6 : f32 to vector<8x128xf32>
    %8 = arith.mulf %7, %5 : vector<8x128xf32>
    %9 = arith.addf %8, %0 : vector<8x128xf32>
    %c0_7 = arith.constant 0 : index
    %c0_8 = arith.constant 0 : index
    %10 = vector.load %arg5[%c0_7, %c0_8] : memref<8x128xf32, #tpu.memory_space<vmem>>, vector<8x128xf32>
    tpu.vector_store %arg5[%c0_7, %c0_8], %9 {strides = array<i32>} : memref<8x128xf32, #tpu.memory_space<vmem>>, vector<8x128xf32>,
    return
  }
  func.func @transform_0(%arg0: i32) -> (i32, i32) {
    %c0_i32 = arith.constant 0 : i32
    %c0_i32_0 = arith.constant 0 : i32
    %c0_i32_1 = arith.constant 0 : i32
    return %c0_i32, %c0_i32_0 : i32, i32
  }
  func.func @transform_1(%arg0: i32) -> (i32, i32) {
    %c0_i32 = arith.constant 0 : i32
    %c0_i32_0 = arith.constant 0 : i32
    return %arg0, %c0_i32 : i32, i32
  }
  func.func @transform_2(%arg0: i32) -> (i32, i32) {
    %c0_i32 = arith.constant 0 : i32
    %c0_i32_0 = arith.constant 0 : i32
    %c0_i32_1 = arith.constant 0 : i32
    return %c0_i32, %c0_i32_0 : i32, i32
  }
  func.func @transform_3(%arg0: i32) -> (i32, i32) {
    %c0_i32 = arith.constant 0 : i32
    %c0_i32_0 = arith.constant 0 : i32
    %c0_i32_1 = arith.constant 0 : i32
    return %c0_i32, %c0_i32_0 : i32, i32
  }
  func.func @transform_4(%arg0: i32) -> (i32, i32) {
    %c0_i32 = arith.constant 0 : i32
    %c0_i32_0 = arith.constant 0 : i32
    return %arg0, %c0_i32 : i32, i32
  }
}

</mosaic_0001>

<llo_original>
// kernel: tpu_custom_call.1
$region0: #{tpu_custom_call.1}
  #allocation0 [shape = 'u32[]', space=smem, size = 0x4, offset = 0x4, fixed_abs, tag = 'smem constant byte address 0x4 - core index']
  #allocation1 [shape = 'u32[144,128]{1,0:T(1,128)}', space=vmem, size = 0x12000, scoped, tag = 'internal scratch']
  #allocation2 [shape = 'f32[1,1]{1,0:T(1,128)S(6)}', space=smem, size = 0x200, scoped, tag = 'scoped memory for tpu_custom_call.1']
  %s0 = inlined_call_operand.<no memory space> [shape: f32[1,1], index: 0, kind: input, shape index: {}]
  %s1 = inlined_call_operand.hbm [shape: f32[8,128], index: 1, kind: input, shape index: {}]
  %s2 = inlined_call_operand.hbm [shape: f32[128,128], index: 2, kind: input, shape index: {}]
  %s3 = inlined_call_operand.vmem [shape: f32[1,128], index: 3, kind: input, shape index: {}]
  %s4 = inlined_call_operand.hbm [shape: f32[8,128], index: 4, kind: output, shape index: {}]
  %s5 = sld [smem:[#allocation0]]
  $region34: #{tpu_custom_call.1} parent=0
    _
  %s7 = ssub.s32 1, %s5
  %s8 = scalar_select 0, %s7, %s5
  %9 = sst [smem:[#allocation2]] %s0
  $region1: #{tpu_custom_call.1} parent=0
    #allocation3 [shape = 'u8[4096]{0}', space=vmem, size = 0x1000, scoped, tag = 'input window, operand 1, single buffered']
    #allocation4 [shape = 's32[1]{0}', space=sflag, size = 0x4, scoped, tag = 'scoped memory for tpu_custom_call.1']
    #allocation5 [shape = 's32[1]{0}', space=sflag, size = 0x4, scoped, tag = 'scoped memory for tpu_custom_call.1']
    #allocation6 [shape = 'u8[65536]{0}', space=vmem, size = 0x10000, scoped, tag = 'input window, operand 2, single buffered']
    #allocation7 [shape = 's32[1]{0}', space=sflag, size = 0x4, scoped, tag = 'scoped memory for tpu_custom_call.1']
    #allocation8 [shape = 'u8[4096]{0}', space=vmem, size = 0x1000, scoped, tag = 'output window, operand 0, single buffered']
    %10 = vsyncpa [#allocation4], 0
    %11 = vsyncpa [#allocation7], 0
    %12 = vsyncpa [#allocation5], 0
    // Predicated region
    $region2: #{tpu_custom_call.1} parent=1 // pred_check
      _
    $region3: #{tpu_custom_call.1} parent=1 // pred_check_branch
      %14 = sbr.rel (0) target = $region5
    $region4: #{tpu_custom_call.1} parent=1 // pred_region
      _
    $region5: #{tpu_custom_call.1} parent=1 // pred_fallthru
      _
    // Predicated region
    $region6: #{tpu_custom_call.1} parent=1 // pred_check
      _
    $region7: #{tpu_custom_call.1} parent=1 // pred_check_branch
      %16 = sbr.rel (0) target = $region9
    $region8: #{tpu_custom_call.1} parent=1 // pred_region
      %s18 = ssub.s32 128, 128
      %19 = vsyncadd [#allocation4], %s18
      %s21 = sshll.u32 [#allocation3], 4
      %s22 = int_to_ptr.vmem [resolvable:$true] %s21
      %24 = dma.hbm_to_vmem [thread:$0]  %s1, 128, %s22, [#allocation4]
    $region9: #{tpu_custom_call.1} parent=1 // pred_fallthru
      _
    // Predicated region
    $region10: #{tpu_custom_call.1} parent=1 // pred_check
      _
    $region11: #{tpu_custom_call.1} parent=1 // pred_check_branch
      %26 = sbr.rel (0) target = $region13
    $region12: #{tpu_custom_call.1} parent=1 // pred_region
      %s28 = ssub.s32 2048, 2048
      %29 = vsyncadd [#allocation7], %s28
      %s30 = sshll.u32 [#allocation6], 4
      %s31 = int_to_ptr.vmem [resolvable:$true] %s30
      %36 = dma.hbm_to_vmem [thread:$0]  %s2, 2048, %s31, [#allocation7], 128, 128, 8
    $region13: #{tpu_custom_call.1} parent=1 // pred_fallthru
      _
    // Predicated region
    $region14: #{tpu_custom_call.1} parent=1 // pred_check
      _
    $region15: #{tpu_custom_call.1} parent=1 // pred_check_branch
      %38 = sbr.rel (0) target = $region17
    $region16: #{tpu_custom_call.1} parent=1 // pred_region
      _
    $region17: #{tpu_custom_call.1} parent=1 // pred_fallthru
      _
    // Predicated region
    $region18: #{tpu_custom_call.1} parent=1 // pred_check
      _
    $region19: #{tpu_custom_call.1} parent=1 // pred_check_branch
      %40 = sbr.rel (0) target = $region21
    $region20: #{tpu_custom_call.1} parent=1 // pred_region
      %41 = dma.done [#allocation4], 128
    $region21: #{tpu_custom_call.1} parent=1 // pred_fallthru
      _
    // Predicated region
    $region22: #{tpu_custom_call.1} parent=1 // pred_check
      _
    $region23: #{tpu_custom_call.1} parent=1 // pred_check_branch
      %43 = sbr.rel (0) target = $region25
    $region24: #{tpu_custom_call.1} parent=1 // pred_region
      %44 = dma.done [#allocation7], 2048
    $region25: #{tpu_custom_call.1} parent=1 // pred_fallthru
      _
    %v45 = vld [vmem:[#allocation3] sm:$0xff]
    %v46 = vld [vmem:[#allocation6] sm:$0xff]
    %v47 = vld [vmem:[#allocation6 + $0x8] sm:$0xff]
    %v48 = vld [vmem:[#allocation6 + $0x10] sm:$0xff]
    %v49 = vld [vmem:[#allocation6 + $0x18] sm:$0xff]
    %v50 = vld [vmem:[#allocation6 + $0x20] sm:$0xff]
    %v51 = vld [vmem:[#allocation6 + $0x28] sm:$0xff]
    %v52 = vld [vmem:[#allocation6 + $0x30] sm:$0xff]
    %v53 = vld [vmem:[#allocation6 + $0x38] sm:$0xff]
    %v54 = vld [vmem:[#allocation6 + $0x40] sm:$0xff]
    %v55 = vld [vmem:[#allocation6 + $0x48] sm:$0xff]
    %v56 = vld [vmem:[#allocation6 + $0x50] sm:$0xff]
    %v57 = vld [vmem:[#allocation6 + $0x58] sm:$0xff]
    %v58 = vld [vmem:[#allocation6 + $0x60] sm:$0xff]
    %v59 = vld [vmem:[#allocation6 + $0x68] sm:$0xff]
    %v60 = vld [vmem:[#allocation6 + $0x70] sm:$0xff]
    %v61 = vld [vmem:[#allocation6 + $0x78] sm:$0xff]
    %v62 = vld [vmem:[%s3] sm:$0x1]
    %v64 = vlaneseq
    %v65 = vshrl.u32 %v64, 7
    %v66 = vsub.s32 0, %v65
    %v67 = vrot.slane %v62, %v66
    %69 = vmatprep.subr.mxu0 0.0
    %70 = vmatpush1.msra.mxu0 %v61
    %71 = vmatprep.subr.mxu0 0.0
    %72 = vmatpush1.msra.mxu0 %v60
    %73 = vmatprep.subr.mxu0 0.0
    %74 = vmatpush1.msra.mxu0 %v59
    %75 = vmatprep.subr.mxu0 0.0
    %76 = vmatpush1.msra.mxu0 %v58
    %77 = vmatprep.subr.mxu0 0.0
    %78 = vmatpush1.msra.mxu0 %v57
    %79 = vmatprep.subr.mxu0 0.0
    %80 = vmatpush1.msra.mxu0 %v56
    %81 = vmatprep.subr.mxu0 0.0
    %82 = vmatpush1.msra.mxu0 %v55
    %83 = vmatprep.subr.mxu0 0.0
    %84 = vmatpush1.msra.mxu0 %v54
    %85 = vmatprep.subr.mxu0 0.0
    %86 = vmatpush1.msra.mxu0 %v53
    %87 = vmatprep.subr.mxu0 0.0
    %88 = vmatpush1.msra.mxu0 %v52
    %89 = vmatprep.subr.mxu0 0.0
    %90 = vmatpush1.msra.mxu0 %v51
    %91 = vmatprep.subr.mxu0 0.0
    %92 = vmatpush1.msra.mxu0 %v50
    %93 = vmatprep.subr.mxu0 0.0
    %94 = vmatpush1.msra.mxu0 %v49
    %95 = vmatprep.subr.mxu0 0.0
    %96 = vmatpush1.msra.mxu0 %v48
    %97 = vmatprep.subr.mxu0 0.0
    %98 = vmatpush1.msra.mxu0 %v47
    %99 = vmatprep.subr.mxu0 0.0
    %100 = vmatpush1.msra.mxu0 %v46
    %101 = vmatprep.subr.mxu0 0.0
    %102 = vmatpush2.msra.mxu0 0.0
    %103 = vmatprep.subr.mxu0 0.0
    %104 = vmatpush2.msra.mxu0 0.0
    %105 = vmatprep.subr.mxu0 0.0
    %106 = vmatpush2.msra.mxu0 0.0
    %107 = vmatprep.subr.mxu0 0.0
    %108 = vmatpush2.msra.mxu0 0.0
    %109 = vmatprep.subr.mxu0 0.0
    %110 = vmatpush2.msra.mxu0 0.0
    %111 = vmatprep.subr.mxu0 0.0
    %112 = vmatpush2.msra.mxu0 0.0
    %113 = vmatprep.subr.mxu0 0.0
    %114 = vmatpush2.msra.mxu0 0.0
    %115 = vmatprep.subr.mxu0 0.0
    %116 = vmatpush2.msra.mxu0 0.0
    %117 = vmatprep.subr.mxu0 0.0
    %118 = vmatpush2.msra.mxu0 0.0
    %119 = vmatprep.subr.mxu0 0.0
    %120 = vmatpush2.msra.mxu0 0.0
    %121 = vmatprep.subr.mxu0 0.0
    %122 = vmatpush2.msra.mxu0 0.0
    %123 = vmatprep.subr.mxu0 0.0
    %124 = vmatpush2.msra.mxu0 0.0
    %125 = vmatprep.subr.mxu0 0.0
    %126 = vmatpush2.msra.mxu0 0.0
    %127 = vmatprep.subr.mxu0 0.0
    %128 = vmatpush2.msra.mxu0 0.0
    %129 = vmatprep.subr.mxu0 0.0
    %130 = vmatpush2.msra.mxu0 0.0
    %131 = vmatprep.subr.mxu0 0.0
    %132 = vmatpush2.msra.mxu0 0.0
    %133 = vmatprep.mubr.f32.mxu0 0.0
    %134 = vmatmul.mubr.f32.gmra.mxu0 %v45
    %v135 = vpop.f32.mrf.mxu0
    %v136 = vadd.f32 %v67, %v135
    %v137 = vpop.f32.mrf.mxu0
    %138 = vdwg.mxu0
    %s139 = sld [smem:[#allocation2]]
    %v140 = vstv %s139
    %v141 = vmul.f32 %v140, %v136
    %v142 = vadd.f32 %v141, %v45
    %143 = vst [vmem:[#allocation8] sm:$0xff] %v142
    // Predicated region
    $region26: #{tpu_custom_call.1} parent=1 // pred_check
      _
    $region27: #{tpu_custom_call.1} parent=1 // pred_check_branch
      %145 = sbr.rel (0) target = $region29
    $region28: #{tpu_custom_call.1} parent=1 // pred_region
      %s147 = ssub.s32 128, 128
      %148 = vsyncadd [#allocation5], %s147
      %s150 = sshll.u32 [#allocation8], 4
      %s151 = int_to_ptr.vmem [resolvable:$true] %s150
      %153 = dma.vmem_to_hbm [thread:$0]  %s151, 128, %s4, [#allocation5]
    $region29: #{tpu_custom_call.1} parent=1 // pred_fallthru
      _
    // Predicated region
    $region30: #{tpu_custom_call.1} parent=1 // pred_check
      _
    $region31: #{tpu_custom_call.1} parent=1 // pred_check_branch
      %155 = sbr.rel (0) target = $region33
    $region32: #{tpu_custom_call.1} parent=1 // pred_region
      %156 = dma.done [#allocation5], 128
    $region33: #{tpu_custom_call.1} parent=1 // pred_fallthru
      _
    %157 = vsyncpa [#allocation4], 1
    %158 = vsyncpa [#allocation7], 1
    %159 = vsyncpa [#allocation5], 1

</llo_original>
